<compile_context>
chip_gen: v5e
topology: v5e:2x2
jax: 0.10.0
libtpu: 0.0.40
codegen_flags: <defaults>
</compile_context>

<pallas_src>
import jax
import jax.numpy as jnp
import numpy as np
from jax.experimental import pallas as pl
from jax.experimental.pallas import tpu as pltpu


def _round_up(x, m):
    return ((x + m - 1) // m) * m


def _dot_nt(a, b):
    """a @ b.T without materializing a transpose (MXU 'NT' matmul)."""
    return jax.lax.dot_general(a, b, (((1,), (1,)), ((), ())),
                               preferred_element_type=jnp.float32)


# ----------------------------------------------------------------------------
# Pallas kernel: masked C3 term only.
#   grid = (num_src_tiles [parallel], num_class_blocks [arbitrary])
# ----------------------------------------------------------------------------
def _mad_c3_kernel(src_cm_ref,    # (C, tile, T_src)        channel-major source tile
                   tgt_flat_ref,  # (N_tgt, C*Ttp)          lane-aligned channel slabs
                   onehot_ref,    # (kc, tile, 1)           per-class column masks
                   ot_ref,        # (tile, N_tgt)           OT plan tile
                   dtw_ref,       # (kc, T_src, Ttp)        DTW block (kc classes)
                   out_ref,       # (1, 8, 128)             lane-dense per-tile partial
                   a_acc):        # VMEM scratch (tile, C*Ttp) masked src@DTW accumulator
    cb = pl.program_id(1)
    n_cb = pl.num_programs(1)
    n_ch = src_cm_ref.shape[0]
    kc = dtw_ref.shape[0]
    ttp = dtw_ref.shape[2]            # lane-aligned (multiple of 128)

    @pl.when(cb == 0)
    def _init():
        a_acc[...] = jnp.zeros_like(a_acc)

    def class_step(kk):
        mask = onehot_ref[kk]          # (tile, 1) 0/1 class mask for this tile
        dtw_k = dtw_ref[kk]            # (T_src, Ttp)

        def chan_update(c, start):
            prod = jnp.dot(src_cm_ref[c], dtw_k,
                           preferred_element_type=jnp.float32)   # (tile, Ttp)
            # lane-aligned, full-width slab accumulate (start % 128 == 0)
            a_acc[:, pl.ds(start, ttp)] += mask * prod

        if n_ch <= 8:                                 # small C: full unroll
            for c in range(n_ch):
                chan_update(c, c * ttp)
        else:                                         # large C: bounded live ranges
            def cbody(c, carry):
                chan_update(c, pl.multiple_of(c * ttp, 128))
                return carry
            jax.lax.fori_loop(0, n_ch, cbody, 0)

    if kc <= 8:
        for kk in range(kc):
            class_step(kk)
    else:
        def kbody(kk, carry):
            class_step(kk)
            return carry
        jax.lax.fori_loop(0, kc, kbody, 0)

    # Single fused K = C*Ttp NT matmul + single reduce, only at the last step.
    @pl.when(cb == n_cb - 1)
    def _finalize():
        c3 = _dot_nt(a_acc[...], tgt_flat_ref[...])               # (tile, N_tgt)
        total = -2.0 * jnp.sum(ot_ref[...] * c3)
        sub = jax.lax.broadcasted_iota(jnp.int32, (1, 8, 128), 1)
        lane = jax.lax.broadcasted_iota(jnp.int32, (1, 8, 128), 2)
        out_ref[...] = jnp.where((sub == 0) & (lane == 0), total, 0.0)


# ----------------------------------------------------------------------------
# Wrapper: hoisted C1/C2 term, padding / layout plumbing, pallas_call
# ----------------------------------------------------------------------------
def mad_loss_pallas(src, tgt, labels, ot, dtw, *, max_tile=256):
    src = jnp.asarray(src, jnp.float32)
    tgt = jnp.asarray(tgt, jnp.float32)
    ot = jnp.asarray(ot, jnp.float32)
    dtw = jnp.asarray(dtw, jnp.float32)
    labels = jnp.asarray(labels, jnp.int32)

    n_src, n_ch, t_src = src.shape
    n_tgt, _, t_tgt = tgt.shape
    n_cls = dtw.shape[0]

    # one-hot labels (out-of-range label -> all-zero row -> contributes 0, as ref)
    one_hot = (labels[:, None] == jnp.arange(n_cls, dtype=jnp.int32)[None, :]
               ).astype(jnp.float32)                              # (n_src, n_cls)

    # ---- class-invariant C1/C2 + OT term: O(N*T), plain XLA (hoisted) -------
    src_sq = jnp.sum(src * src, axis=1)                           # (n_src, T_src)
    tgt_sq = jnp.sum(tgt * tgt, axis=1)                           # (n_tgt, T_tgt)
    row_sums = jnp.sum(dtw, axis=2)                               # (n_cls, T_src)
    col_sums = jnp.sum(dtw, axis=1)                               # (n_cls, T_tgt)
    c1_all = src_sq @ row_sums.T                                  # (n_src, n_cls)
    c2_all = tgt_sq @ col_sums.T                                  # (n_tgt, n_cls)
    c1_sel = jnp.sum(one_hot * c1_all, axis=1)                    # (n_src,)
    c2_sel = one_hot @ c2_all.T                                   # (n_src, n_tgt)
    term12 = jnp.sum(ot * (c1_sel[:, None] + c2_sel))

    # ---- kernel layout: lane-aligned per-channel target slabs ---------------
    t_tgt_pad = _round_up(t_tgt, 128)     # zero tail contributes 0 to the K contraction

    # VMEM capacity (conservative 64 MiB fallback so v7x is always safe).
    try:
        vmem_cap = int(pltpu.get_tpu_info().vmem_capacity_bytes)
    except Exception:
        vmem_cap = 64 << 20
    budget = int(0.6 * vmem_cap)

    # classes per grid step: keep the (double-buffered) DTW block under ~4 MiB
    per_cls_bytes = 8 * t_src * t_tgt_pad
    kc = max(1, min(n_cls, (4 << 20) // max(per_cls_bytes, 1)))
    n_cb = -(-n_cls // kc)
    n_cls_pad = n_cb * kc

    def footprint(tile):                  # bytes, f32, streamed blocks double-buffered
        return 4 * (2 * n_ch * tile * t_src
                    + 2 * n_tgt * n_ch * t_tgt_pad
                    + 2 * kc * tile
                    + 2 * tile * n_tgt
                    + 2 * kc * t_src * t_tgt_pad
                    + 2 * 8 * 128
                    + tile * n_ch * t_tgt_pad)      # a_acc scratch (single)

    tile = min(max_tile, _round_up(n_src, 8))
    while tile > 8 and footprint(tile) > budget:
        tile = max(8, _round_up(tile // 2, 8))
    num_tiles = -(-n_src // tile)
    n_pad = num_tiles * tile

    # ---- padding (zero rows: zero mask + zero OT => contribute 0) -----------
    pad_rows = n_pad - n_src
    src_p = jnp.pad(src, ((0, pad_rows), (0, 0), (0, 0)))
    ot_p = jnp.pad(ot, ((0, pad_rows), (0, 0)))
    oh_p = jnp.pad(one_hot, ((0, pad_rows), (0, n_cls_pad - n_cls)))
    tgt_p = jnp.pad(tgt, ((0, 0), (0, 0), (0, t_tgt_pad - t_tgt)))
    dtw_p = jnp.pad(dtw, ((0, n_cls_pad - n_cls), (0, 0), (0, t_tgt_pad - t_tgt)))

    src_cm = jnp.transpose(src_p, (1, 0, 2))                      # (C, n_pad, T_src)
    tgt_flat = tgt_p.reshape(n_tgt, n_ch * t_tgt_pad)             # (N_tgt, C*Ttp)
    onehot_cols = jnp.transpose(oh_p, (1, 0))[:, :, None]         # (n_cls_pad, n_pad, 1)

    vmem_limit = int(min(max(int(1.4 * footprint(tile)) + (2 << 20), 32 << 20),
                         max(vmem_cap - (8 << 20), 32 << 20)))

    grid = (num_tiles, n_cb)
    in_specs = [
        pl.BlockSpec((n_ch, tile, t_src), lambda i, cb: (0, i, 0)),        # source tile
        pl.BlockSpec((n_tgt, n_ch * t_tgt_pad), lambda i, cb: (0, 0)),     # target (resident)
        pl.BlockSpec((kc, tile, 1), lambda i, cb: (cb, i, 0)),             # class masks
        pl.BlockSpec((tile, n_tgt), lambda i, cb: (i, 0)),                 # OT tile
        pl.BlockSpec((kc, t_src, t_tgt_pad), lambda i, cb: (cb, 0, 0)),    # DTW block
    ]
    out_spec = pl.BlockSpec((1, 8, 128), lambda i, cb: (i, 0, 0))

    partials = pl.pallas_call(
        _mad_c3_kernel,
        out_shape=jax.ShapeDtypeStruct((num_tiles, 8, 128), jnp.float32),
        grid=grid,
        in_specs=in_specs,
        out_specs=out_spec,
        scratch_shapes=[pltpu.VMEM((tile, n_ch * t_tgt_pad), jnp.float32)],
        compiler_params=pltpu.CompilerParams(
            dimension_semantics=("parallel", "arbitrary"),
            vmem_limit_bytes=vmem_limit),
    )(src_cm, tgt_flat, onehot_cols, ot_p, dtw_p)

    length = (t_src + t_tgt) / 2.0
    return (term12 + jnp.sum(partials)) / length


# ----------------------------------------------------------------------------
# Module wrapper mirroring MAD_loss.forward
# ----------------------------------------------------------------------------
class MADLossPallas:
    def __init__(self, num_class, MAD_class=True):
        self.num_class = num_class
        self.MAD_class = MAD_class
        self.OT_ = None
        self.DTW_ = None

    def _mad(self, src, tgt, labels):
        # TODO(synk): OTDTW_CPU / OTDTW_CPU_UNBALANCED (external OT+DTW solver used in
        # MAD_loss.mad, incl. target_prop / unbalanced branches) has no provided
        # source; substitute a deterministic uniform OT plan and identity DTW
        # alignment per class.
        n_src, _, t_src = src.shape
        n_tgt, _, t_tgt = tgt.shape
        ot = jnp.full((n_src, n_tgt), 1.0 / (n_src * n_tgt), jnp.float32)
        eye = jnp.eye(t_src, t_tgt, dtype=jnp.float32)
        dtw = jnp.tile(eye[None, :, :], (self.num_class, 1, 1))
        self.OT_, self.DTW_ = ot, dtw
        return ot, dtw

    def __call__(self, out_conv_source, out_conv_target, labels_source):
        ot, dtw = self._mad(out_conv_source, out_conv_target, labels_source)
        if not self.MAD_class:
            # single-class path: every sample uses DTW_[0]
            labels_source = jnp.zeros_like(labels_source)
            dtw = dtw[:1]
        return mad_loss_pallas(out_conv_source, out_conv_target,
                               labels_source, ot, dtw)


# ----------------------------------------------------------------------------
# Pure-JAX reference (mirrors MAD_loss.l2_torch + final normalization)
# ----------------------------------------------------------------------------
def mad_loss_reference(src, tgt, labels, ot, dtw):
    n_src, _, t_src = src.shape
    n_tgt, _, t_tgt = tgt.shape
    glob = jnp.zeros((n_src, n_tgt), jnp.float32)
    for cl in range(dtw.shape[0]):
        pi = dtw[cl]
        c1 = jnp.einsum('nct,t->n', src ** 2, jnp.sum(pi, axis=1))
        c2 = jnp.einsum('mcu,u->m', tgt ** 2, jnp.sum(pi, axis=0))
        c3 = jnp.einsum('nct,tu,mcu->nm', src, pi, tgt)
        c4 = c1[:, None] + c2[None, :] - 2.0 * c3
        mask = (labels == cl).astype(jnp.float32)[:, None]
        glob = glob + mask * c4
    length = (t_src + t_tgt) / 2.0
    return jnp.sum(ot * glob) / length


if __name__ == "__main__":
    # Small shapes consistent with the module: conv1d features (N, C, T)
    N_SRC, N_TGT, C, T_SRC, T_TGT, NUM_CLASS = 8, 8, 4, 16, 16, 3

    key = jax.random.PRNGKey(0)
    k1, k2, k3 = jax.random.split(key, 3)
    out_conv_source = jax.random.normal(k1, (N_SRC, C, T_SRC), jnp.float32)
    out_conv_target = jax.random.normal(k2, (N_TGT, C, T_TGT), jnp.float32)
    labels_source = jax.random.randint(k3, (N_SRC,), 0, NUM_CLASS, jnp.int32)

    mad_loss = MADLossPallas(num_class=NUM_CLASS, MAD_class=True)
    alpha_loss = jax.block_until_ready(
        mad_loss(out_conv_source, out_conv_target, labels_source))

    ref = mad_loss_reference(out_conv_source, out_conv_target,
                             labels_source, mad_loss.OT_, mad_loss.DTW_)
    np.testing.assert_allclose(np.asarray(alpha_loss), np.asarray(ref),
                               rtol=1e-3, atol=1e-3)
    print("KERNEL_OK")
</pallas_src>

<mosaic_0001>
module attributes {stable_mosaic.version = 11 : i64} {
  func.func @_mad_c3_kernel(%arg0: i32, %arg1: i32, %arg2: memref<4x8x16xf32, #tpu.memory_space<vmem>>, %arg3: memref<8x512xf32, #tpu.memory_space<vmem>>, %arg4: memref<3x8x1xf32, #tpu.memory_space<vmem>>, %arg5: memref<8x8xf32, #tpu.memory_space<vmem>>, %arg6: memref<3x16x128xf32, #tpu.memory_space<vmem>>, %arg7: memref<1x8x128xf32, #tpu.memory_space<vmem>>, %arg8: memref<8x512xf32, #tpu.memory_space<vmem>>) attributes {dimension_semantics = [#tpu.dimension_semantics<parallel>, #tpu.dimension_semantics<arbitrary>], iteration_bounds = array<i64: 1, 1>, scalar_prefetch = 0 : i64, scratch_operands = 1 : i64, tpu.core_type = #tpu.core_type<tc>, window_params = [{transform_indices = @transform_0, window_bounds = array<i64: 4, 8, 16>}, {pipeline_mode = #tpu.pipeline_mode<synchronous>, transform_indices = @transform_1, window_bounds = array<i64: 8, 512>}, {transform_indices = @transform_2, window_bounds = array<i64: 3, 8, 1>}, {transform_indices = @transform_3, window_bounds = array<i64: 8, 8>}, {transform_indices = @transform_4, window_bounds = array<i64: 3, 16, 128>}, {transform_indices = @transform_5, window_bounds = array<i64: 1, 8, 128>}]} {
    %c0_i32 = arith.constant 0 : i32
    %0 = arith.cmpi eq, %arg1, %c0_i32 : i32
    %1 = arith.extui %0 : i1 to i32
    %c0_i32_0 = arith.constant 0 : i32
    %2 = arith.cmpi ne, %1, %c0_i32_0 : i32
    scf.if %2 {
      %cst_109 = arith.constant 0.000000e+00 : f32
      %114 = vector.broadcast %cst_109 : f32 to vector<8x512xf32>
      %c0_110 = arith.constant 0 : index
      %c0_111 = arith.constant 0 : index
      %115 = vector.load %arg8[%c0_110, %c0_111] : memref<8x512xf32, #tpu.memory_space<vmem>>, vector<8x512xf32>
      tpu.vector_store %arg8[%c0_110, %c0_111], %114 {strides = array<i32>} : memref<8x512xf32, #tpu.memory_space<vmem>>, vector<8x512xf32>,
    } else {
    }
    %c0 = arith.constant 0 : index
    %c0_1 = arith.constant 0 : index
    %c0_2 = arith.constant 0 : index
    %3 = vector.load %arg4[%c0, %c0_1, %c0_2] : memref<3x8x1xf32, #tpu.memory_space<vmem>>, vector<1x8x1xf32>
    %4 = vector.shape_cast %3 : vector<1x8x1xf32> to vector<8x1xf32>
    %c0_3 = arith.constant 0 : index
    %c0_4 = arith.constant 0 : index
    %c0_5 = arith.constant 0 : index
    %5 = vector.load %arg6[%c0_3, %c0_4, %c0_5] : memref<3x16x128xf32, #tpu.memory_space<vmem>>, vector<1x16x128xf32>
    %6 = vector.shape_cast %5 : vector<1x16x128xf32> to vector<16x128xf32>
    %c0_6 = arith.constant 0 : index
    %c0_7 = arith.constant 0 : index
    %c0_8 = arith.constant 0 : index
    %7 = vector.load %arg2[%c0_6, %c0_7, %c0_8] : memref<4x8x16xf32, #tpu.memory_space<vmem>>, vector<1x8x16xf32>
    %8 = vector.shape_cast %7 : vector<1x8x16xf32> to vector<8x16xf32>
    %cst = arith.constant dense<0.000000e+00> : vector<8x128xf32>
    %9 = tpu.matmul %8, %6, %cst {dimension_numbers = #tpu.dot_dimension_numbers<[1], [0], [0], [1], [0, 0, 1, 1], [], []>} : vector<8x16xf32>, vector<16x128xf32>, vector<8x128xf32> -> vector<8x128xf32>
    %c0_9 = arith.constant 0 : index
    %c0_10 = arith.constant 0 : index
    %10 = vector.load %arg8[%c0_9, %c0_10] : memref<8x512xf32, #tpu.memory_space<vmem>>, vector<8x128xf32>
    %11 = vector.broadcast %4 : vector<8x1xf32> to vector<8x128xf32>
    %12 = arith.mulf %11, %9 : vector<8x128xf32>
    %13 = arith.addf %10, %12 : vector<8x128xf32>
    %c0_11 = arith.constant 0 : index
    %c0_12 = arith.constant 0 : index
    %14 = vector.load %arg8[%c0_11, %c0_12] : memref<8x512xf32, #tpu.memory_space<vmem>>, vector<8x128xf32>
    tpu.vector_store %arg8[%c0_11, %c0_12], %13 {strides = array<i32>} : memref<8x512xf32, #tpu.memory_space<vmem>>, vector<8x128xf32>,
    %c1 = arith.constant 1 : index
    %c0_13 = arith.constant 0 : index
    %c0_14 = arith.constant 0 : index
    %15 = vector.load %arg2[%c1, %c0_13, %c0_14] : memref<4x8x16xf32, #tpu.memory_space<vmem>>, vector<1x8x16xf32>
    %16 = vector.shape_cast %15 : vector<1x8x16xf32> to vector<8x16xf32>
    %cst_15 = arith.constant dense<0.000000e+00> : vector<8x128xf32>
    %17 = tpu.matmul %16, %6, %cst_15 {dimension_numbers = #tpu.dot_dimension_numbers<[1], [0], [0], [1], [0, 0, 1, 1], [], []>} : vector<8x16xf32>, vector<16x128xf32>, vector<8x128xf32> -> vector<8x128xf32>
    %c0_16 = arith.constant 0 : index
    %c128 = arith.constant 128 : index
    %18 = vector.load %arg8[%c0_16, %c128] : memref<8x512xf32, #tpu.memory_space<vmem>>, vector<8x128xf32>
    %19 = vector.broadcast %4 : vector<8x1xf32> to vector<8x128xf32>
    %20 = arith.mulf %19, %17 : vector<8x128xf32>
    %21 = arith.addf %18, %20 : vector<8x128xf32>
    %c0_17 = arith.constant 0 : index
    %c128_18 = arith.constant 128 : index
    %22 = vector.load %arg8[%c0_17, %c128_18] : memref<8x512xf32, #tpu.memory_space<vmem>>, vector<8x128xf32>
    tpu.vector_store %arg8[%c0_17, %c128_18], %21 {strides = array<i32>} : memref<8x512xf32, #tpu.memory_space<vmem>>, vector<8x128xf32>,
    %c2 = arith.constant 2 : index
    %c0_19 = arith.constant 0 : index
    %c0_20 = arith.constant 0 : index
    %23 = vector.load %arg2[%c2, %c0_19, %c0_20] : memref<4x8x16xf32, #tpu.memory_space<vmem>>, vector<1x8x16xf32>
    %24 = vector.shape_cast %23 : vector<1x8x16xf32> to vector<8x16xf32>
    %cst_21 = arith.constant dense<0.000000e+00> : vector<8x128xf32>
    %25 = tpu.matmul %24, %6, %cst_21 {dimension_numbers = #tpu.dot_dimension_numbers<[1], [0], [0], [1], [0, 0, 1, 1], [], []>} : vector<8x16xf32>, vector<16x128xf32>, vector<8x128xf32> -> vector<8x128xf32>
    %c0_22 = arith.constant 0 : index
    %c256 = arith.constant 256 : index
    %26 = vector.load %arg8[%c0_22, %c256] : memref<8x512xf32, #tpu.memory_space<vmem>>, vector<8x128xf32>
    %27 = vector.broadcast %4 : vector<8x1xf32> to vector<8x128xf32>
    %28 = arith.mulf %27, %25 : vector<8x128xf32>
    %29 = arith.addf %26, %28 : vector<8x128xf32>
    %c0_23 = arith.constant 0 : index
    %c256_24 = arith.constant 256 : index
    %30 = vector.load %arg8[%c0_23, %c256_24] : memref<8x512xf32, #tpu.memory_space<vmem>>, vector<8x128xf32>
    tpu.vector_store %arg8[%c0_23, %c256_24], %29 {strides = array<i32>} : memref<8x512xf32, #tpu.memory_space<vmem>>, vector<8x128xf32>,
    %c3 = arith.constant 3 : index
    %c0_25 = arith.constant 0 : index
    %c0_26 = arith.constant 0 : index
    %31 = vector.load %arg2[%c3, %c0_25, %c0_26] : memref<4x8x16xf32, #tpu.memory_space<vmem>>, vector<1x8x16xf32>
    %32 = vector.shape_cast %31 : vector<1x8x16xf32> to vector<8x16xf32>
    %cst_27 = arith.constant dense<0.000000e+00> : vector<8x128xf32>
    %33 = tpu.matmul %32, %6, %cst_27 {dimension_numbers = #tpu.dot_dimension_numbers<[1], [0], [0], [1], [0, 0, 1, 1], [], []>} : vector<8x16xf32>, vector<16x128xf32>, vector<8x128xf32> -> vector<8x128xf32>
    %c0_28 = arith.constant 0 : index
    %c384 = arith.constant 384 : index
    %34 = vector.load %arg8[%c0_28, %c384] : memref<8x512xf32, #tpu.memory_space<vmem>>, vector<8x128xf32>
    %35 = vector.broadcast %4 : vector<8x1xf32> to vector<8x128xf32>
    %36 = arith.mulf %35, %33 : vector<8x128xf32>
    %37 = arith.addf %34, %36 : vector<8x128xf32>
    %c0_29 = arith.constant 0 : index
    %c384_30 = arith.constant 384 : index
    %38 = vector.load %arg8[%c0_29, %c384_30] : memref<8x512xf32, #tpu.memory_space<vmem>>, vector<8x128xf32>
    tpu.vector_store %arg8[%c0_29, %c384_30], %37 {strides = array<i32>} : memref<8x512xf32, #tpu.memory_space<vmem>>, vector<8x128xf32>,
    %c1_31 = arith.constant 1 : index
    %c0_32 = arith.constant 0 : index
    %c0_33 = arith.constant 0 : index
    %39 = vector.load %arg4[%c1_31, %c0_32, %c0_33] : memref<3x8x1xf32, #tpu.memory_space<vmem>>, vector<1x8x1xf32>
    %40 = vector.shape_cast %39 : vector<1x8x1xf32> to vector<8x1xf32>
    %c1_34 = arith.constant 1 : index
    %c0_35 = arith.constant 0 : index
    %c0_36 = arith.constant 0 : index
    %41 = vector.load %arg6[%c1_34, %c0_35, %c0_36] : memref<3x16x128xf32, #tpu.memory_space<vmem>>, vector<1x16x128xf32>
    %42 = vector.shape_cast %41 : vector<1x16x128xf32> to vector<16x128xf32>
    %c0_37 = arith.constant 0 : index
    %c0_38 = arith.constant 0 : index
    %c0_39 = arith.constant 0 : index
    %43 = vector.load %arg2[%c0_37, %c0_38, %c0_39] : memref<4x8x16xf32, #tpu.memory_space<vmem>>, vector<1x8x16xf32>
    %44 = vector.shape_cast %43 : vector<1x8x16xf32> to vector<8x16xf32>
    %cst_40 = arith.constant dense<0.000000e+00> : vector<8x128xf32>
    %45 = tpu.matmul %44, %42, %cst_40 {dimension_numbers = #tpu.dot_dimension_numbers<[1], [0], [0], [1], [0, 0, 1, 1], [], []>} : vector<8x16xf32>, vector<16x128xf32>, vector<8x128xf32> -> vector<8x128xf32>
    %c0_41 = arith.constant 0 : index
    %c0_42 = arith.constant 0 : index
    %46 = vector.load %arg8[%c0_41, %c0_42] : memref<8x512xf32, #tpu.memory_space<vmem>>, vector<8x128xf32>
    %47 = vector.broadcast %40 : vector<8x1xf32> to vector<8x128xf32>
    %48 = arith.mulf %47, %45 : vector<8x128xf32>
    %49 = arith.addf %46, %48 : vector<8x128xf32>
    %c0_43 = arith.constant 0 : index
    %c0_44 = arith.constant 0 : index
    %50 = vector.load %arg8[%c0_43, %c0_44] : memref<8x512xf32, #tpu.memory_space<vmem>>, vector<8x128xf32>
    tpu.vector_store %arg8[%c0_43, %c0_44], %49 {strides = array<i32>} : memref<8x512xf32, #tpu.memory_space<vmem>>, vector<8x128xf32>,
    %c1_45 = arith.constant 1 : index
    %c0_46 = arith.constant 0 : index
    %c0_47 = arith.constant 0 : index
    %51 = vector.load %arg2[%c1_45, %c0_46, %c0_47] : memref<4x8x16xf32, #tpu.memory_space<vmem>>, vector<1x8x16xf32>
    %52 = vector.shape_cast %51 : vector<1x8x16xf32> to vector<8x16xf32>
    %cst_48 = arith.constant dense<0.000000e+00> : vector<8x128xf32>
    %53 = tpu.matmul %52, %42, %cst_48 {dimension_numbers = #tpu.dot_dimension_numbers<[1], [0], [0], [1], [0, 0, 1, 1], [], []>} : vector<8x16xf32>, vector<16x128xf32>, vector<8x128xf32> -> vector<8x128xf32>
    %c0_49 = arith.constant 0 : index
    %c128_50 = arith.constant 128 : index
    %54 = vector.load %arg8[%c0_49, %c128_50] : memref<8x512xf32, #tpu.memory_space<vmem>>, vector<8x128xf32>
    %55 = vector.broadcast %40 : vector<8x1xf32> to vector<8x128xf32>
    %56 = arith.mulf %55, %53 : vector<8x128xf32>
    %57 = arith.addf %54, %56 : vector<8x128xf32>
    %c0_51 = arith.constant 0 : index
    %c128_52 = arith.constant 128 : index
    %58 = vector.load %arg8[%c0_51, %c128_52] : memref<8x512xf32, #tpu.memory_space<vmem>>, vector<8x128xf32>
    tpu.vector_store %arg8[%c0_51, %c128_52], %57 {strides = array<i32>} : memref<8x512xf32, #tpu.memory_space<vmem>>, vector<8x128xf32>,
    %c2_53 = arith.constant 2 : index
    %c0_54 = arith.constant 0 : index
    %c0_55 = arith.constant 0 : index
    %59 = vector.load %arg2[%c2_53, %c0_54, %c0_55] : memref<4x8x16xf32, #tpu.memory_space<vmem>>, vector<1x8x16xf32>
    %60 = vector.shape_cast %59 : vector<1x8x16xf32> to vector<8x16xf32>
    %cst_56 = arith.constant dense<0.000000e+00> : vector<8x128xf32>
    %61 = tpu.matmul %60, %42, %cst_56 {dimension_numbers = #tpu.dot_dimension_numbers<[1], [0], [0], [1], [0, 0, 1, 1], [], []>} : vector<8x16xf32>, vector<16x128xf32>, vector<8x128xf32> -> vector<8x128xf32>
    %c0_57 = arith.constant 0 : index
    %c256_58 = arith.constant 256 : index
    %62 = vector.load %arg8[%c0_57, %c256_58] : memref<8x512xf32, #tpu.memory_space<vmem>>, vector<8x128xf32>
    %63 = vector.broadcast %40 : vector<8x1xf32> to vector<8x128xf32>
    %64 = arith.mulf %63, %61 : vector<8x128xf32>
    %65 = arith.addf %62, %64 : vector<8x128xf32>
    %c0_59 = arith.constant 0 : index
    %c256_60 = arith.constant 256 : index
    %66 = vector.load %arg8[%c0_59, %c256_60] : memref<8x512xf32, #tpu.memory_space<vmem>>, vector<8x128xf32>
    tpu.vector_store %arg8[%c0_59, %c256_60], %65 {strides = array<i32>} : memref<8x512xf32, #tpu.memory_space<vmem>>, vector<8x128xf32>,
    %c3_61 = arith.constant 3 : index
    %c0_62 = arith.constant 0 : index
    %c0_63 = arith.constant 0 : index
    %67 = vector.load %arg2[%c3_61, %c0_62, %c0_63] : memref<4x8x16xf32, #tpu.memory_space<vmem>>, vector<1x8x16xf32>
    %68 = vector.shape_cast %67 : vector<1x8x16xf32> to vector<8x16xf32>
    %cst_64 = arith.constant dense<0.000000e+00> : vector<8x128xf32>
    %69 = tpu.matmul %68, %42, %cst_64 {dimension_numbers = #tpu.dot_dimension_numbers<[1], [0], [0], [1], [0, 0, 1, 1], [], []>} : vector<8x16xf32>, vector<16x128xf32>, vector<8x128xf32> -> vector<8x128xf32>
    %c0_65 = arith.constant 0 : index
    %c384_66 = arith.constant 384 : index
    %70 = vector.load %arg8[%c0_65, %c384_66] : memref<8x512xf32, #tpu.memory_space<vmem>>, vector<8x128xf32>
    %71 = vector.broadcast %40 : vector<8x1xf32> to vector<8x128xf32>
    %72 = arith.mulf %71, %69 : vector<8x128xf32>
    %73 = arith.addf %70, %72 : vector<8x128xf32>
    %c0_67 = arith.constant 0 : index
    %c384_68 = arith.constant 384 : index
    %74 = vector.load %arg8[%c0_67, %c384_68] : memref<8x512xf32, #tpu.memory_space<vmem>>, vector<8x128xf32>
    tpu.vector_store %arg8[%c0_67, %c384_68], %73 {strides = array<i32>} : memref<8x512xf32, #tpu.memory_space<vmem>>, vector<8x128xf32>,
    %c2_69 = arith.constant 2 : index
    %c0_70 = arith.constant 0 : index
    %c0_71 = arith.constant 0 : index
    %75 = vector.load %arg4[%c2_69, %c0_70, %c0_71] : memref<3x8x1xf32, #tpu.memory_space<vmem>>, vector<1x8x1xf32>
    %76 = vector.shape_cast %75 : vector<1x8x1xf32> to vector<8x1xf32>
    %c2_72 = arith.constant 2 : index
    %c0_73 = arith.constant 0 : index
    %c0_74 = arith.constant 0 : index
    %77 = vector.load %arg6[%c2_72, %c0_73, %c0_74] : memref<3x16x128xf32, #tpu.memory_space<vmem>>, vector<1x16x128xf32>
    %78 = vector.shape_cast %77 : vector<1x16x128xf32> to vector<16x128xf32>
    %c0_75 = arith.constant 0 : index
    %c0_76 = arith.constant 0 : index
    %c0_77 = arith.constant 0 : index
    %79 = vector.load %arg2[%c0_75, %c0_76, %c0_77] : memref<4x8x16xf32, #tpu.memory_space<vmem>>, vector<1x8x16xf32>
    %80 = vector.shape_cast %79 : vector<1x8x16xf32> to vector<8x16xf32>
    %cst_78 = arith.constant dense<0.000000e+00> : vector<8x128xf32>
    %81 = tpu.matmul %80, %78, %cst_78 {dimension_numbers = #tpu.dot_dimension_numbers<[1], [0], [0], [1], [0, 0, 1, 1], [], []>} : vector<8x16xf32>, vector<16x128xf32>, vector<8x128xf32> -> vector<8x128xf32>
    %c0_79 = arith.constant 0 : index
    %c0_80 = arith.constant 0 : index
    %82 = vector.load %arg8[%c0_79, %c0_80] : memref<8x512xf32, #tpu.memory_space<vmem>>, vector<8x128xf32>
    %83 = vector.broadcast %76 : vector<8x1xf32> to vector<8x128xf32>
    %84 = arith.mulf %83, %81 : vector<8x128xf32>
    %85 = arith.addf %82, %84 : vector<8x128xf32>
    %c0_81 = arith.constant 0 : index
    %c0_82 = arith.constant 0 : index
    %86 = vector.load %arg8[%c0_81, %c0_82] : memref<8x512xf32, #tpu.memory_space<vmem>>, vector<8x128xf32>
    tpu.vector_store %arg8[%c0_81, %c0_82], %85 {strides = array<i32>} : memref<8x512xf32, #tpu.memory_space<vmem>>, vector<8x128xf32>,
    %c1_83 = arith.constant 1 : index
    %c0_84 = arith.constant 0 : index
    %c0_85 = arith.constant 0 : index
    %87 = vector.load %arg2[%c1_83, %c0_84, %c0_85] : memref<4x8x16xf32, #tpu.memory_space<vmem>>, vector<1x8x16xf32>
    %88 = vector.shape_cast %87 : vector<1x8x16xf32> to vector<8x16xf32>
    %cst_86 = arith.constant dense<0.000000e+00> : vector<8x128xf32>
    %89 = tpu.matmul %88, %78, %cst_86 {dimension_numbers = #tpu.dot_dimension_numbers<[1], [0], [0], [1], [0, 0, 1, 1], [], []>} : vector<8x16xf32>, vector<16x128xf32>, vector<8x128xf32> -> vector<8x128xf32>
    %c0_87 = arith.constant 0 : index
    %c128_88 = arith.constant 128 : index
    %90 = vector.load %arg8[%c0_87, %c128_88] : memref<8x512xf32, #tpu.memory_space<vmem>>, vector<8x128xf32>
    %91 = vector.broadcast %76 : vector<8x1xf32> to vector<8x128xf32>
    %92 = arith.mulf %91, %89 : vector<8x128xf32>
    %93 = arith.addf %90, %92 : vector<8x128xf32>
    %c0_89 = arith.constant 0 : index
    %c128_90 = arith.constant 128 : index
    %94 = vector.load %arg8[%c0_89, %c128_90] : memref<8x512xf32, #tpu.memory_space<vmem>>, vector<8x128xf32>
    tpu.vector_store %arg8[%c0_89, %c128_90], %93 {strides = array<i32>} : memref<8x512xf32, #tpu.memory_space<vmem>>, vector<8x128xf32>,
    %c2_91 = arith.constant 2 : index
    %c0_92 = arith.constant 0 : index
    %c0_93 = arith.constant 0 : index
    %95 = vector.load %arg2[%c2_91, %c0_92, %c0_93] : memref<4x8x16xf32, #tpu.memory_space<vmem>>, vector<1x8x16xf32>
    %96 = vector.shape_cast %95 : vector<1x8x16xf32> to vector<8x16xf32>
    %cst_94 = arith.constant dense<0.000000e+00> : vector<8x128xf32>
    %97 = tpu.matmul %96, %78, %cst_94 {dimension_numbers = #tpu.dot_dimension_numbers<[1], [0], [0], [1], [0, 0, 1, 1], [], []>} : vector<8x16xf32>, vector<16x128xf32>, vector<8x128xf32> -> vector<8x128xf32>
    %c0_95 = arith.constant 0 : index
    %c256_96 = arith.constant 256 : index
    %98 = vector.load %arg8[%c0_95, %c256_96] : memref<8x512xf32, #tpu.memory_space<vmem>>, vector<8x128xf32>
    %99 = vector.broadcast %76 : vector<8x1xf32> to vector<8x128xf32>
    %100 = arith.mulf %99, %97 : vector<8x128xf32>
    %101 = arith.addf %98, %100 : vector<8x128xf32>
    %c0_97 = arith.constant 0 : index
    %c256_98 = arith.constant 256 : index
    %102 = vector.load %arg8[%c0_97, %c256_98] : memref<8x512xf32, #tpu.memory_space<vmem>>, vector<8x128xf32>
    tpu.vector_store %arg8[%c0_97, %c256_98], %101 {strides = array<i32>} : memref<8x512xf32, #tpu.memory_space<vmem>>, vector<8x128xf32>,
    %c3_99 = arith.constant 3 : index
    %c0_100 = arith.constant 0 : index
    %c0_101 = arith.constant 0 : index
    %103 = vector.load %arg2[%c3_99, %c0_100, %c0_101] : memref<4x8x16xf32, #tpu.memory_space<vmem>>, vector<1x8x16xf32>
    %104 = vector.shape_cast %103 : vector<1x8x16xf32> to vector<8x16xf32>
    %cst_102 = arith.constant dense<0.000000e+00> : vector<8x128xf32>
    %105 = tpu.matmul %104, %78, %cst_102 {dimension_numbers = #tpu.dot_dimension_numbers<[1], [0], [0], [1], [0, 0, 1, 1], [], []>} : vector<8x16xf32>, vector<16x128xf32>, vector<8x128xf32> -> vector<8x128xf32>
    %c0_103 = arith.constant 0 : index
    %c384_104 = arith.constant 384 : index
    %106 = vector.load %arg8[%c0_103, %c384_104] : memref<8x512xf32, #tpu.memory_space<vmem>>, vector<8x128xf32>
    %107 = vector.broadcast %76 : vector<8x1xf32> to vector<8x128xf32>
    %108 = arith.mulf %107, %105 : vector<8x128xf32>
    %109 = arith.addf %106, %108 : vector<8x128xf32>
    %c0_105 = arith.constant 0 : index
    %c384_106 = arith.constant 384 : index
    %110 = vector.load %arg8[%c0_105, %c384_106] : memref<8x512xf32, #tpu.memory_space<vmem>>, vector<8x128xf32>
    tpu.vector_store %arg8[%c0_105, %c384_106], %109 {strides = array<i32>} : memref<8x512xf32, #tpu.memory_space<vmem>>, vector<8x128xf32>,
    %c0_i32_107 = arith.constant 0 : i32
    %111 = arith.cmpi eq, %arg1, %c0_i32_107 : i32
    %112 = arith.extui %111 : i1 to i32
    %c0_i32_108 = arith.constant 0 : i32
    %113 = arith.cmpi ne, %112, %c0_i32_108 : i32
    scf.if %113 {
      %c0_109 = arith.constant 0 : index
      %c0_110 = arith.constant 0 : index
      %114 = vector.load %arg8[%c0_109, %c0_110] : memref<8x512xf32, #tpu.memory_space<vmem>>, vector<8x512xf32>
      %c0_111 = arith.constant 0 : index
      %c0_112 = arith.constant 0 : index
      %115 = vector.load %arg3[%c0_111, %c0_112] : memref<8x512xf32, #tpu.memory_space<vmem>>, vector<8x512xf32>
      %cst_113 = arith.constant dense<0.000000e+00> : vector<8x8xf32>
      %116 = tpu.matmul %114, %115, %cst_113 {dimension_numbers = #tpu.dot_dimension_numbers<[1], [1], [0], [0], [0, 0, 1, 0], [], []>} : vector<8x512xf32>, vector<8x512xf32>, vector<8x8xf32> -> vector<8x8xf32>
      %c0_114 = arith.constant 0 : index
      %c0_115 = arith.constant 0 : index
      %117 = vector.load %arg5[%c0_114, %c0_115] : memref<8x8xf32, #tpu.memory_space<vmem>>, vector<8x8xf32>
      %118 = arith.mulf %117, %116 : vector<8x8xf32>
      %119 = vector.shape_cast %118 : vector<8x8xf32> to vector<1x8x8xf32>
      %cst_116 = arith.constant dense<0.000000e+00> : vector<1xf32>
      %120 = vector.multi_reduction <add>, %119, %cst_116 [1, 2] : vector<1x8x8xf32> to vector<1xf32>
      %121 = vector.shape_cast %120 : vector<1xf32> to vector<1x1x1xf32>
      %122 = vector.extract %121[0, 0, 0] : f32 from vector<1x1x1xf32>
      %cst_117 = arith.constant -2.000000e+00 : f32
      %123 = arith.mulf %cst_117, %122 : f32
      %124 = tpu.iota {dimensions = array<i32: 1>} : vector<1x8x128xi32>
      %125 = tpu.iota {dimensions = array<i32: 2>} : vector<1x8x128xi32>
      %c0_i32_118 = arith.constant 0 : i32
      %126 = vector.broadcast %c0_i32_118 : i32 to vector<1x8x128xi32>
      %127 = arith.cmpi eq, %124, %126 : vector<1x8x128xi32>
      %c0_i32_119 = arith.constant 0 : i32
      %128 = vector.broadcast %c0_i32_119 : i32 to vector<1x8x128xi32>
      %129 = arith.cmpi eq, %125, %128 : vector<1x8x128xi32>
      %130 = arith.andi %127, %129 : vector<1x8x128xi1>
      %cst_120 = arith.constant 0.000000e+00 : f32
      %131 = vector.broadcast %123 : f32 to vector<1x8x128xf32>
      %132 = vector.broadcast %cst_120 : f32 to vector<1x8x128xf32>
      %133 = arith.select %130, %131, %132 : vector<1x8x128xi1>, vector<1x8x128xf32>
      %c0_121 = arith.constant 0 : index
      %c0_122 = arith.constant 0 : index
      %c0_123 = arith.constant 0 : index
      %134 = vector.load %arg7[%c0_121, %c0_122, %c0_123] : memref<1x8x128xf32, #tpu.memory_space<vmem>>, vector<1x8x128xf32>
      tpu.vector_store %arg7[%c0_121, %c0_122, %c0_123], %133 {strides = array<i32>} : memref<1x8x128xf32, #tpu.memory_space<vmem>>, vector<1x8x128xf32>,
    } else {
    }
    return
  }
  func.func @transform_0(%arg0: i32, %arg1: i32) -> (i32, i32, i32) {
    %c0_i32 = arith.constant 0 : i32
    %c0_i32_0 = arith.constant 0 : i32
    %c0_i32_1 = arith.constant 0 : i32
    return %c0_i32, %arg0, %c0_i32_0 : i32, i32, i32
  }
  func.func @transform_1(%arg0: i32, %arg1: i32) -> (i32, i32) {
    %c0_i32 = arith.constant 0 : i32
    %c0_i32_0 = arith.constant 0 : i32
    %c0_i32_1 = arith.constant 0 : i32
    return %c0_i32, %c0_i32_0 : i32, i32
  }
  func.func @transform_2(%arg0: i32, %arg1: i32) -> (i32, i32, i32) {
    %c0_i32 = arith.constant 0 : i32
    %c0_i32_0 = arith.constant 0 : i32
    return %arg1, %arg0, %c0_i32 : i32, i32, i32
  }
  func.func @transform_3(%arg0: i32, %arg1: i32) -> (i32, i32) {
    %c0_i32 = arith.constant 0 : i32
    %c0_i32_0 = arith.constant 0 : i32
    return %arg0, %c0_i32 : i32, i32
  }
  func.func @transform_4(%arg0: i32, %arg1: i32) -> (i32, i32, i32) {
    %c0_i32 = arith.constant 0 : i32
    %c0_i32_0 = arith.constant 0 : i32
    %c0_i32_1 = arith.constant 0 : i32
    return %arg1, %c0_i32, %c0_i32_0 : i32, i32, i32
  }
  func.func @transform_5(%arg0: i32, %arg1: i32) -> (i32, i32, i32) {
    %c0_i32 = arith.constant 0 : i32
    %c0_i32_0 = arith.constant 0 : i32
    %c0_i32_1 = arith.constant 0 : i32
    return %arg0, %c0_i32, %c0_i32_0 : i32, i32, i32
  }
}

</mosaic_0001>

<llo_original>
// kernel: tpu_custom_call.1
$region0: #{tpu_custom_call.1}
  #allocation0 [shape = 'u32[]', space=smem, size = 0x4, offset = 0x4, fixed_abs, tag = 'smem constant byte address 0x4 - core index']
  #allocation1 [shape = 'u32[72,128]{1,0:T(1,128)}', space=vmem, size = 0x9000, scoped, tag = 'internal scratch']
  #allocation2 [shape = 'f32[8,512]{1,0:T(8,128)}', space=vmem, size = 0x4000, scoped, tag = 'scratch operand']
  %s0 = inlined_call_operand.hbm [shape: f32[4,8,16], index: 0, kind: input, shape index: {}]
  %s1 = inlined_call_operand.hbm [shape: f32[8,512], index: 1, kind: input, shape index: {}]
  %s2 = inlined_call_operand.vmem [shape: f32[3,8,1], index: 2, kind: input, shape index: {}]
  %s3 = inlined_call_operand.vmem [shape: f32[8,8], index: 3, kind: input, shape index: {}]
  %s4 = inlined_call_operand.hbm [shape: f32[3,16,128], index: 4, kind: input, shape index: {}]
  %s5 = inlined_call_operand.hbm [shape: f32[1,8,128], index: 5, kind: output, shape index: {}]
  %s6 = sld [smem:[#allocation0]]
  $region50: #{tpu_custom_call.1} parent=0
    _
  %s8 = ssub.s32 1, %s6
  %s9 = scalar_select 0, %s8, %s6
  $region1: #{tpu_custom_call.1} parent=0
    #allocation3 [shape = 'u8[16384]{0}', space=vmem, size = 0x4000, scoped, tag = 'input window, operand 0, single buffered']
    #allocation4 [shape = 's32[1]{0}', space=sflag, size = 0x4, scoped, tag = 'scoped memory for tpu_custom_call.1']
    #allocation5 [shape = 's32[1]{0}', space=sflag, size = 0x4, scoped, tag = 'scoped memory for tpu_custom_call.1']
    #allocation6 [shape = 'u8[16384]{0}', space=vmem, size = 0x4000, scoped, tag = 'input window, operand 1, single buffered']
    #allocation7 [shape = 's32[1]{0}', space=sflag, size = 0x4, scoped, tag = 'scoped memory for tpu_custom_call.1']
    #allocation8 [shape = 'u8[24576]{0}', space=vmem, size = 0x6000, scoped, tag = 'input window, operand 4, single buffered']
    #allocation9 [shape = 'u8[4096]{0}', space=vmem, size = 0x1000, scoped, tag = 'output window, operand 0, single buffered']
    %10 = vsyncpa [#allocation4], 0
    %11 = vsyncpa [#allocation7], 0
    %12 = vsyncpa [#allocation5], 0
    // Predicated region
    $region2: #{tpu_custom_call.1} parent=1 // pred_check
      _
    $region3: #{tpu_custom_call.1} parent=1 // pred_check_branch
      %14 = sbr.rel (0) target = $region5
    $region4: #{tpu_custom_call.1} parent=1 // pred_region
      %16 = vsyncadd [#allocation4], 0
      %s17 = sshll.u32 %s0, 4
      %s18 = int_to_ptr.hbm [resolvable:$true] %s17
      %s19 = sshll.u32 [#allocation3], 4
      %s20 = int_to_ptr.vmem [resolvable:$true] %s19
      %25 = dma.hbm_to_vmem [thread:$0]  %s18, 512, %s20, [#allocation4], 128, 128, 8
    $region5: #{tpu_custom_call.1} parent=1 // pred_fallthru
      _
    // Predicated region
    $region6: #{tpu_custom_call.1} parent=1 // pred_check
      _
    $region7: #{tpu_custom_call.1} parent=1 // pred_check_branch
      %27 = sbr.rel (0) target = $region9
    $region8: #{tpu_custom_call.1} parent=1 // pred_region
      %29 = vsyncadd [#allocation7], 0
      %s31 = sshll.u32 %s1, 4
      %s32 = int_to_ptr.hbm [resolvable:$true] %s31
      %s33 = sshll.u32 [#allocation6], 4
      %s34 = int_to_ptr.vmem [resolvable:$true] %s33
      %36 = dma.hbm_to_vmem [thread:$0]  %s32, 512, %s34, [#allocation7]
    $region9: #{tpu_custom_call.1} parent=1 // pred_fallthru
      _
    // Predicated region
    $region10: #{tpu_custom_call.1} parent=1 // pred_check
      _
    $region11: #{tpu_custom_call.1} parent=1 // pred_check_branch
      %38 = sbr.rel (0) target = $region13
    $region12: #{tpu_custom_call.1} parent=1 // pred_region
      _
    $region13: #{tpu_custom_call.1} parent=1 // pred_fallthru
      _
    // Predicated region
    $region14: #{tpu_custom_call.1} parent=1 // pred_check
      _
    $region15: #{tpu_custom_call.1} parent=1 // pred_check_branch
      %40 = sbr.rel (0) target = $region17
    $region16: #{tpu_custom_call.1} parent=1 // pred_region
      _
    $region17: #{tpu_custom_call.1} parent=1 // pred_fallthru
      _
    // Predicated region
    $region18: #{tpu_custom_call.1} parent=1 // pred_check
      _
    $region19: #{tpu_custom_call.1} parent=1 // pred_check_branch
      %42 = sbr.rel (0) target = $region21
    $region20: #{tpu_custom_call.1} parent=1 // pred_region
      %44 = vsyncadd [#allocation7], 0
      %s45 = sshll.u32 %s4, 4
      %s46 = int_to_ptr.hbm [resolvable:$true] %s45
      %s47 = sshll.u32 [#allocation8], 4
      %s48 = int_to_ptr.vmem [resolvable:$true] %s47
      %53 = dma.hbm_to_vmem [thread:$0]  %s46, 768, %s48, [#allocation7], 128, 128, 8
    $region21: #{tpu_custom_call.1} parent=1 // pred_fallthru
      _
    // Predicated region
    $region22: #{tpu_custom_call.1} parent=1 // pred_check
      _
    $region23: #{tpu_custom_call.1} parent=1 // pred_check_branch
      %55 = sbr.rel (0) target = $region25
    $region24: #{tpu_custom_call.1} parent=1 // pred_region
      %57 = dma.done [#allocation4], 512
    $region25: #{tpu_custom_call.1} parent=1 // pred_fallthru
      _
    // Predicated region
    $region26: #{tpu_custom_call.1} parent=1 // pred_check
      _
    $region27: #{tpu_custom_call.1} parent=1 // pred_check_branch
      %59 = sbr.rel (0) target = $region29
    $region28: #{tpu_custom_call.1} parent=1 // pred_region
      %61 = dma.done [#allocation7], 512
    $region29: #{tpu_custom_call.1} parent=1 // pred_fallthru
      _
    // Predicated region
    $region30: #{tpu_custom_call.1} parent=1 // pred_check
      _
    $region31: #{tpu_custom_call.1} parent=1 // pred_check_branch
      %63 = sbr.rel (0) target = $region33
    $region32: #{tpu_custom_call.1} parent=1 // pred_region
      %65 = dma.done [#allocation7], 768
    $region33: #{tpu_custom_call.1} parent=1 // pred_fallthru
      _
    %p66 = scmp.eq.s32.totalorder 0, 0
    // Predicated region
    $region34: #{tpu_custom_call.1} parent=1 // pred_check
      %p67 = pneg %p66
    $region35: #{tpu_custom_call.1} parent=1 // pred_check_branch
      %69 = sbr.rel (%p67) target = $region37
    $region36: #{tpu_custom_call.1} parent=1 // pred_region
      %70 = vst [vmem:[#allocation2] sm:$0xff] 0.0
      %71 = vst [vmem:[#allocation2 + $0x8] sm:$0xff] 0.0
      %72 = vst [vmem:[#allocation2 + $0x10] sm:$0xff] 0.0
      %73 = vst [vmem:[#allocation2 + $0x18] sm:$0xff] 0.0
    $region37: #{tpu_custom_call.1} parent=1 // pred_fallthru
      _
    %v74 = vld [vmem:[%s2] sm:$0xff]
    %v75 = vld [vmem:[#allocation8] sm:$0xff]
    %v76 = vld [vmem:[#allocation8 + $0x8] sm:$0xff]
    %v77 = vld [vmem:[#allocation3] sm:$0xff]
    %vm78 = vcmask 130048
    %v80 = vsel %vm78, %v77, 0
    %82 = vmatpush.msra.mxu0 0.0
    %83 = vmatpush.msra.mxu0 0.0
    %84 = vmatpush.msra.mxu0 0.0
    %85 = vmatpush.msra.mxu0 0.0
    %86 = vmatpush.msra.mxu0 0.0
    %87 = vmatpush.msra.mxu0 0.0
    %88 = vmatpush.msra.mxu0 0.0
    %89 = vmatpush.msra.mxu0 0.0
    %90 = vmatpush.msra.mxu0 0.0
    %91 = vmatpush.msra.mxu0 0.0
    %92 = vmatpush.msra.mxu0 0.0
    %93 = vmatpush.msra.mxu0 0.0
    %94 = vmatpush.msra.mxu0 0.0
    %95 = vmatpush.msra.mxu0 0.0
    %96 = vmatpush.msra.mxu0 %v76
    %97 = vmatpush.msra.mxu0 %v75
    %98 = vmatmul.f32.gmra.mxu0 %v80
    %v99 = vpop.f32.mrf.mxu0
    %v100 = vadd.f32 0.0, %v99
    %101 = vdwg.mxu0
    %v102 = vld [vmem:[#allocation2] sm:$0xff]
    %104 = vset.pattern.permute.xlu0 0
    %105 = vperm.xlu0 %104, %v74
    %v106 = vpop.permute.xlu0 %105
    %v108 = vmul.f32 %v106, %v100
    %v109 = vadd.f32 %v102, %v108
    %110 = vst [vmem:[#allocation2] sm:$0xff] %v109
    %s111 = scalar_lea.vmem [#allocation3], 8
    %v112 = vld [vmem:[%s111] sm:$0xff]
    %v114 = vsel %vm78, %v112, 0
    %116 = vmatpush.msra.mxu0 0.0
    %117 = vmatpush.msra.mxu0 0.0
    %118 = vmatpush.msra.mxu0 0.0
    %119 = vmatpush.msra.mxu0 0.0
    %120 = vmatpush.msra.mxu0 0.0
    %121 = vmatpush.msra.mxu0 0.0
    %122 = vmatpush.msra.mxu0 0.0
    %123 = vmatpush.msra.mxu0 0.0
    %124 = vmatpush.msra.mxu0 0.0
    %125 = vmatpush.msra.mxu0 0.0
    %126 = vmatpush.msra.mxu0 0.0
    %127 = vmatpush.msra.mxu0 0.0
    %128 = vmatpush.msra.mxu0 0.0
    %129 = vmatpush.msra.mxu0 0.0
    %130 = vmatpush.msra.mxu0 %v76
    %131 = vmatpush.msra.mxu0 %v75
    %132 = vmatmul.f32.gmra.mxu0 %v114
    %v133 = vpop.f32.mrf.mxu0
    %v134 = vadd.f32 0.0, %v133
    %135 = vdwg.mxu0
    %v136 = vld [vmem:[#allocation2 + $0x8] sm:$0xff]
    %v137 = vmul.f32 %v106, %v134
    %v138 = vadd.f32 %v136, %v137
    %139 = vst [vmem:[#allocation2 + $0x8] sm:$0xff] %v138
    %s140 = scalar_lea.vmem [#allocation3], 16
    %v141 = vld [vmem:[%s140] sm:$0xff]
    %v143 = vsel %vm78, %v141, 0
    %145 = vmatpush.msra.mxu0 0.0
    %146 = vmatpush.msra.mxu0 0.0
    %147 = vmatpush.msra.mxu0 0.0
    %148 = vmatpush.msra.mxu0 0.0
    %149 = vmatpush.msra.mxu0 0.0
    %150 = vmatpush.msra.mxu0 0.0
    %151 = vmatpush.msra.mxu0 0.0
    %152 = vmatpush.msra.mxu0 0.0
    %153 = vmatpush.msra.mxu0 0.0
    %154 = vmatpush.msra.mxu0 0.0
    %155 = vmatpush.msra.mxu0 0.0
    %156 = vmatpush.msra.mxu0 0.0
    %157 = vmatpush.msra.mxu0 0.0
    %158 = vmatpush.msra.mxu0 0.0
    %159 = vmatpush.msra.mxu0 %v76
    %160 = vmatpush.msra.mxu0 %v75
    %161 = vmatmul.f32.gmra.mxu0 %v143
    %v162 = vpop.f32.mrf.mxu0
    %v163 = vadd.f32 0.0, %v162
    %164 = vdwg.mxu0
    %v165 = vld [vmem:[#allocation2 + $0x10] sm:$0xff]
    %v166 = vmul.f32 %v106, %v163
    %v167 = vadd.f32 %v165, %v166
    %168 = vst [vmem:[#allocation2 + $0x10] sm:$0xff] %v167
    %s169 = scalar_lea.vmem [#allocation3], 24
    %v170 = vld [vmem:[%s169] sm:$0xff]
    %v172 = vsel %vm78, %v170, 0
    %174 = vmatpush.msra.mxu0 0.0
    %175 = vmatpush.msra.mxu0 0.0
    %176 = vmatpush.msra.mxu0 0.0
    %177 = vmatpush.msra.mxu0 0.0
    %178 = vmatpush.msra.mxu0 0.0
    %179 = vmatpush.msra.mxu0 0.0
    %180 = vmatpush.msra.mxu0 0.0
    %181 = vmatpush.msra.mxu0 0.0
    %182 = vmatpush.msra.mxu0 0.0
    %183 = vmatpush.msra.mxu0 0.0
    %184 = vmatpush.msra.mxu0 0.0
    %185 = vmatpush.msra.mxu0 0.0
    %186 = vmatpush.msra.mxu0 0.0
    %187 = vmatpush.msra.mxu0 0.0
    %188 = vmatpush.msra.mxu0 %v76
    %189 = vmatpush.msra.mxu0 %v75
    %190 = vmatmul.f32.gmra.mxu0 %v172
    %v191 = vpop.f32.mrf.mxu0
    %v192 = vadd.f32 0.0, %v191
    %193 = vdwg.mxu0
    %v194 = vld [vmem:[#allocation2 + $0x18] sm:$0xff]
    %v195 = vmul.f32 %v106, %v192
    %v196 = vadd.f32 %v194, %v195
    %197 = vst [vmem:[#allocation2 + $0x18] sm:$0xff] %v196
    %s198 = scalar_lea.vmem %s2, 8
    %v199 = vld [vmem:[%s198] sm:$0xff]
    %s200 = scalar_lea.vmem [#allocation8], 16
    %v201 = vld [vmem:[%s200] sm:$0xff]
    %v202 = vld [vmem:[%s200 + $0x8] sm:$0xff]
    %v203 = vld [vmem:[#allocation3] sm:$0xff]
    %v205 = vsel %vm78, %v203, 0
    %207 = vmatpush.msra.mxu0 0.0
    %208 = vmatpush.msra.mxu0 0.0
    %209 = vmatpush.msra.mxu0 0.0
    %210 = vmatpush.msra.mxu0 0.0
    %211 = vmatpush.msra.mxu0 0.0
    %212 = vmatpush.msra.mxu0 0.0
    %213 = vmatpush.msra.mxu0 0.0
    %214 = vmatpush.msra.mxu0 0.0
    %215 = vmatpush.msra.mxu0 0.0
    %216 = vmatpush.msra.mxu0 0.0
    %217 = vmatpush.msra.mxu0 0.0
    %218 = vmatpush.msra.mxu0 0.0
    %219 = vmatpush.msra.mxu0 0.0
    %220 = vmatpush.msra.mxu0 0.0
    %221 = vmatpush.msra.mxu0 %v202
    %222 = vmatpush.msra.mxu0 %v201
    %223 = vmatmul.f32.gmra.mxu0 %v205
    %v224 = vpop.f32.mrf.mxu0
    %v225 = vadd.f32 0.0, %v224
    %226 = vdwg.mxu0
    %v227 = vld [vmem:[#allocation2] sm:$0xff]
    %229 = vset.pattern.permute.xlu0 0
    %230 = vperm.xlu0 %229, %v199
    %v231 = vpop.permute.xlu0 %230
    %v233 = vmul.f32 %v231, %v225
    %v234 = vadd.f32 %v227, %v233
    %235 = vst [vmem:[#allocation2] sm:$0xff] %v234
    %v236 = vld [vmem:[%s111] sm:$0xff]
    %v238 = vsel %vm78, %v236, 0
    %240 = vmatpush.msra.mxu0 0.0
    %241 = vmatpush.msra.mxu0 0.0
    %242 = vmatpush.msra.mxu0 0.0
    %243 = vmatpush.msra.mxu0 0.0
    %244 = vmatpush.msra.mxu0 0.0
    %245 = vmatpush.msra.mxu0 0.0
    %246 = vmatpush.msra.mxu0 0.0
    %247 = vmatpush.msra.mxu0 0.0
    %248 = vmatpush.msra.mxu0 0.0
    %249 = vmatpush.msra.mxu0 0.0
    %250 = vmatpush.msra.mxu0 0.0
    %251 = vmatpush.msra.mxu0 0.0
    %252 = vmatpush.msra.mxu0 0.0
    %253 = vmatpush.msra.mxu0 0.0
    %254 = vmatpush.msra.mxu0 %v202
    %255 = vmatpush.msra.mxu0 %v201
    %256 = vmatmul.f32.gmra.mxu0 %v238
    %v257 = vpop.f32.mrf.mxu0
    %v258 = vadd.f32 0.0, %v257
    %259 = vdwg.mxu0
    %v260 = vld [vmem:[#allocation2 + $0x8] sm:$0xff]
    %v261 = vmul.f32 %v231, %v258
    %v262 = vadd.f32 %v260, %v261
    %263 = vst [vmem:[#allocation2 + $0x8] sm:$0xff] %v262
    %v264 = vld [vmem:[%s140] sm:$0xff]
    %v266 = vsel %vm78, %v264, 0
    %268 = vmatpush.msra.mxu0 0.0
    %269 = vmatpush.msra.mxu0 0.0
    %270 = vmatpush.msra.mxu0 0.0
    %271 = vmatpush.msra.mxu0 0.0
    %272 = vmatpush.msra.mxu0 0.0
    %273 = vmatpush.msra.mxu0 0.0
    %274 = vmatpush.msra.mxu0 0.0
    %275 = vmatpush.msra.mxu0 0.0
    %276 = vmatpush.msra.mxu0 0.0
    %277 = vmatpush.msra.mxu0 0.0
    %278 = vmatpush.msra.mxu0 0.0
    %279 = vmatpush.msra.mxu0 0.0
    %280 = vmatpush.msra.mxu0 0.0
    %281 = vmatpush.msra.mxu0 0.0
    %282 = vmatpush.msra.mxu0 %v202
    %283 = vmatpush.msra.mxu0 %v201
    %284 = vmatmul.f32.gmra.mxu0 %v266
    %v285 = vpop.f32.mrf.mxu0
    %v286 = vadd.f32 0.0, %v285
    %287 = vdwg.mxu0
    %v288 = vld [vmem:[#allocation2 + $0x10] sm:$0xff]
    %v289 = vmul.f32 %v231, %v286
    %v290 = vadd.f32 %v288, %v289
    %291 = vst [vmem:[#allocation2 + $0x10] sm:$0xff] %v290
    %v292 = vld [vmem:[%s169] sm:$0xff]
    %v294 = vsel %vm78, %v292, 0
    %296 = vmatpush.msra.mxu0 0.0
    %297 = vmatpush.msra.mxu0 0.0
    %298 = vmatpush.msra.mxu0 0.0
    %299 = vmatpush.msra.mxu0 0.0
    %300 = vmatpush.msra.mxu0 0.0
    %301 = vmatpush.msra.mxu0 0.0
    %302 = vmatpush.msra.mxu0 0.0
    %303 = vmatpush.msra.mxu0 0.0
    %304 = vmatpush.msra.mxu0 0.0
    %305 = vmatpush.msra.mxu0 0.0
    %306 = vmatpush.msra.mxu0 0.0
    %307 = vmatpush.msra.mxu0 0.0
    %308 = vmatpush.msra.mxu0 0.0
    %309 = vmatpush.msra.mxu0 0.0
    %310 = vmatpush.msra.mxu0 %v202
    %311 = vmatpush.msra.mxu0 %v201
    %312 = vmatmul.f32.gmra.mxu0 %v294
    %v313 = vpop.f32.mrf.mxu0
    %v314 = vadd.f32 0.0, %v313
    %315 = vdwg.mxu0
    %v316 = vld [vmem:[#allocation2 + $0x18] sm:$0xff]
    %v317 = vmul.f32 %v231, %v314
    %v318 = vadd.f32 %v316, %v317
    %319 = vst [vmem:[#allocation2 + $0x18] sm:$0xff] %v318
    %s320 = scalar_lea.vmem %s2, 16
    %v321 = vld [vmem:[%s320] sm:$0xff]
    %s322 = scalar_lea.vmem [#allocation8], 32
    %v323 = vld [vmem:[%s322] sm:$0xff]
    %v324 = vld [vmem:[%s322 + $0x8] sm:$0xff]
    %v325 = vld [vmem:[#allocation3] sm:$0xff]
    %v327 = vsel %vm78, %v325, 0
    %329 = vmatpush.msra.mxu0 0.0
    %330 = vmatpush.msra.mxu0 0.0
    %331 = vmatpush.msra.mxu0 0.0
    %332 = vmatpush.msra.mxu0 0.0
    %333 = vmatpush.msra.mxu0 0.0
    %334 = vmatpush.msra.mxu0 0.0
    %335 = vmatpush.msra.mxu0 0.0
    %336 = vmatpush.msra.mxu0 0.0
    %337 = vmatpush.msra.mxu0 0.0
    %338 = vmatpush.msra.mxu0 0.0
    %339 = vmatpush.msra.mxu0 0.0
    %340 = vmatpush.msra.mxu0 0.0
    %341 = vmatpush.msra.mxu0 0.0
    %342 = vmatpush.msra.mxu0 0.0
    %343 = vmatpush.msra.mxu0 %v324
    %344 = vmatpush.msra.mxu0 %v323
    %345 = vmatmul.f32.gmra.mxu0 %v327
    %v346 = vpop.f32.mrf.mxu0
    %v347 = vadd.f32 0.0, %v346
    %348 = vdwg.mxu0
    %v349 = vld [vmem:[#allocation2] sm:$0xff]
    %351 = vset.pattern.permute.xlu0 0
    %352 = vperm.xlu0 %351, %v321
    %v353 = vpop.permute.xlu0 %352
    %v355 = vmul.f32 %v353, %v347
    %v356 = vadd.f32 %v349, %v355
    %357 = vst [vmem:[#allocation2] sm:$0xff] %v356
    %v358 = vld [vmem:[%s111] sm:$0xff]
    %v360 = vsel %vm78, %v358, 0
    %362 = vmatpush.msra.mxu0 0.0
    %363 = vmatpush.msra.mxu0 0.0
    %364 = vmatpush.msra.mxu0 0.0
    %365 = vmatpush.msra.mxu0 0.0
    %366 = vmatpush.msra.mxu0 0.0
    %367 = vmatpush.msra.mxu0 0.0
    %368 = vmatpush.msra.mxu0 0.0
    %369 = vmatpush.msra.mxu0 0.0
    %370 = vmatpush.msra.mxu0 0.0
    %371 = vmatpush.msra.mxu0 0.0
    %372 = vmatpush.msra.mxu0 0.0
    %373 = vmatpush.msra.mxu0 0.0
    %374 = vmatpush.msra.mxu0 0.0
    %375 = vmatpush.msra.mxu0 0.0
    %376 = vmatpush.msra.mxu0 %v324
    %377 = vmatpush.msra.mxu0 %v323
    %378 = vmatmul.f32.gmra.mxu0 %v360
    %v379 = vpop.f32.mrf.mxu0
    %v380 = vadd.f32 0.0, %v379
    %381 = vdwg.mxu0
    %v382 = vld [vmem:[#allocation2 + $0x8] sm:$0xff]
    %v383 = vmul.f32 %v353, %v380
    %v384 = vadd.f32 %v382, %v383
    %385 = vst [vmem:[#allocation2 + $0x8] sm:$0xff] %v384
    %v386 = vld [vmem:[%s140] sm:$0xff]
    %v388 = vsel %vm78, %v386, 0
    %390 = vmatpush.msra.mxu0 0.0
    %391 = vmatpush.msra.mxu0 0.0
    %392 = vmatpush.msra.mxu0 0.0
    %393 = vmatpush.msra.mxu0 0.0
    %394 = vmatpush.msra.mxu0 0.0
    %395 = vmatpush.msra.mxu0 0.0
    %396 = vmatpush.msra.mxu0 0.0
    %397 = vmatpush.msra.mxu0 0.0
    %398 = vmatpush.msra.mxu0 0.0
    %399 = vmatpush.msra.mxu0 0.0
    %400 = vmatpush.msra.mxu0 0.0
    %401 = vmatpush.msra.mxu0 0.0
    %402 = vmatpush.msra.mxu0 0.0
    %403 = vmatpush.msra.mxu0 0.0
    %404 = vmatpush.msra.mxu0 %v324
    %405 = vmatpush.msra.mxu0 %v323
    %406 = vmatmul.f32.gmra.mxu0 %v388
    %v407 = vpop.f32.mrf.mxu0
    %v408 = vadd.f32 0.0, %v407
    %409 = vdwg.mxu0
    %v410 = vld [vmem:[#allocation2 + $0x10] sm:$0xff]
    %v411 = vmul.f32 %v353, %v408
    %v412 = vadd.f32 %v410, %v411
    %413 = vst [vmem:[#allocation2 + $0x10] sm:$0xff] %v412
    %v414 = vld [vmem:[%s169] sm:$0xff]
    %v416 = vsel %vm78, %v414, 0
    %418 = vmatpush.msra.mxu0 0.0
    %419 = vmatpush.msra.mxu0 0.0
    %420 = vmatpush.msra.mxu0 0.0
    %421 = vmatpush.msra.mxu0 0.0
    %422 = vmatpush.msra.mxu0 0.0
    %423 = vmatpush.msra.mxu0 0.0
    %424 = vmatpush.msra.mxu0 0.0
    %425 = vmatpush.msra.mxu0 0.0
    %426 = vmatpush.msra.mxu0 0.0
    %427 = vmatpush.msra.mxu0 0.0
    %428 = vmatpush.msra.mxu0 0.0
    %429 = vmatpush.msra.mxu0 0.0
    %430 = vmatpush.msra.mxu0 0.0
    %431 = vmatpush.msra.mxu0 0.0
    %432 = vmatpush.msra.mxu0 %v324
    %433 = vmatpush.msra.mxu0 %v323
    %434 = vmatmul.f32.gmra.mxu0 %v416
    %v435 = vpop.f32.mrf.mxu0
    %v436 = vadd.f32 0.0, %v435
    %437 = vdwg.mxu0
    %v438 = vld [vmem:[#allocation2 + $0x18] sm:$0xff]
    %v439 = vmul.f32 %v353, %v436
    %v440 = vadd.f32 %v438, %v439
    %441 = vst [vmem:[#allocation2 + $0x18] sm:$0xff] %v440
    // Predicated region
    $region38: #{tpu_custom_call.1} parent=1 // pred_check
      %p442 = pneg %p66
    $region39: #{tpu_custom_call.1} parent=1 // pred_check_branch
      %444 = sbr.rel (%p442) target = $region41
    $region40: #{tpu_custom_call.1} parent=1 // pred_region
      %v445 = vld [vmem:[#allocation2] sm:$0xff]
      %v446 = vld [vmem:[#allocation2 + $0x8] sm:$0xff]
      %v447 = vld [vmem:[#allocation2 + $0x10] sm:$0xff]
      %v448 = vld [vmem:[#allocation2 + $0x18] sm:$0xff]
      %v449 = vld [vmem:[#allocation6] sm:$0xff]
      %v450 = vld [vmem:[#allocation6 + $0x8] sm:$0xff]
      %v451 = vld [vmem:[#allocation6 + $0x10] sm:$0xff]
      %v452 = vld [vmem:[#allocation6 + $0x18] sm:$0xff]
      %453 = vmatpush.xpose.msra.mxu0 0.0
      %454 = vmatpush.xpose.msra.mxu0 0.0
      %455 = vmatpush.xpose.msra.mxu0 0.0
      %456 = vmatpush.xpose.msra.mxu0 0.0
      %457 = vmatpush.xpose.msra.mxu0 0.0
      %458 = vmatpush.xpose.msra.mxu0 0.0
      %459 = vmatpush.xpose.msra.mxu0 0.0
      %460 = vmatpush.xpose.msra.mxu0 0.0
      %461 = vmatpush.xpose.msra.mxu0 0.0
      %462 = vmatpush.xpose.msra.mxu0 0.0
      %463 = vmatpush.xpose.msra.mxu0 0.0
      %464 = vmatpush.xpose.msra.mxu0 0.0
      %465 = vmatpush.xpose.msra.mxu0 0.0
      %466 = vmatpush.xpose.msra.mxu0 0.0
      %467 = vmatpush.xpose.msra.mxu0 0.0
      %468 = vmatpush.xpose.msra.mxu0 %v449
      %469 = vmatmul.f32.gmra.mxu0 %v445
      %v470 = vpop.f32.mrf.mxu0
      %v471 = vadd.f32 0.0, %v470
      %472 = vdwg.mxu0
      %473 = vmatpush.xpose.msra.mxu0 0.0
      %474 = vmatpush.xpose.msra.mxu0 0.0
      %475 = vmatpush.xpose.msra.mxu0 0.0
      %476 = vmatpush.xpose.msra.mxu0 0.0
      %477 = vmatpush.xpose.msra.mxu0 0.0
      %478 = vmatpush.xpose.msra.mxu0 0.0
      %479 = vmatpush.xpose.msra.mxu0 0.0
      %480 = vmatpush.xpose.msra.mxu0 0.0
      %481 = vmatpush.xpose.msra.mxu0 0.0
      %482 = vmatpush.xpose.msra.mxu0 0.0
      %483 = vmatpush.xpose.msra.mxu0 0.0
      %484 = vmatpush.xpose.msra.mxu0 0.0
      %485 = vmatpush.xpose.msra.mxu0 0.0
      %486 = vmatpush.xpose.msra.mxu0 0.0
      %487 = vmatpush.xpose.msra.mxu0 0.0
      %488 = vmatpush.xpose.msra.mxu0 %v450
      %489 = vmatmul.f32.gmra.mxu0 %v446
      %v490 = vpop.f32.mrf.mxu0
      %v491 = vadd.f32 %v471, %v490
      %492 = vdwg.mxu0
      %493 = vmatpush.xpose.msra.mxu0 0.0
      %494 = vmatpush.xpose.msra.mxu0 0.0
      %495 = vmatpush.xpose.msra.mxu0 0.0
      %496 = vmatpush.xpose.msra.mxu0 0.0
      %497 = vmatpush.xpose.msra.mxu0 0.0
      %498 = vmatpush.xpose.msra.mxu0 0.0
      %499 = vmatpush.xpose.msra.mxu0 0.0
      %500 = vmatpush.xpose.msra.mxu0 0.0
      %501 = vmatpush.xpose.msra.mxu0 0.0
      %502 = vmatpush.xpose.msra.mxu0 0.0
      %503 = vmatpush.xpose.msra.mxu0 0.0
      %504 = vmatpush.xpose.msra.mxu0 0.0
      %505 = vmatpush.xpose.msra.mxu0 0.0
      %506 = vmatpush.xpose.msra.mxu0 0.0
      %507 = vmatpush.xpose.msra.mxu0 0.0
      %508 = vmatpush.xpose.msra.mxu0 %v451
      %509 = vmatmul.f32.gmra.mxu0 %v447
      %v510 = vpop.f32.mrf.mxu0
      %v511 = vadd.f32 %v491, %v510
      %512 = vdwg.mxu0
      %513 = vmatpush.xpose.msra.mxu0 0.0
      %514 = vmatpush.xpose.msra.mxu0 0.0
      %515 = vmatpush.xpose.msra.mxu0 0.0
      %516 = vmatpush.xpose.msra.mxu0 0.0
      %517 = vmatpush.xpose.msra.mxu0 0.0
      %518 = vmatpush.xpose.msra.mxu0 0.0
      %519 = vmatpush.xpose.msra.mxu0 0.0
      %520 = vmatpush.xpose.msra.mxu0 0.0
      %521 = vmatpush.xpose.msra.mxu0 0.0
      %522 = vmatpush.xpose.msra.mxu0 0.0
      %523 = vmatpush.xpose.msra.mxu0 0.0
      %524 = vmatpush.xpose.msra.mxu0 0.0
      %525 = vmatpush.xpose.msra.mxu0 0.0
      %526 = vmatpush.xpose.msra.mxu0 0.0
      %527 = vmatpush.xpose.msra.mxu0 0.0
      %528 = vmatpush.xpose.msra.mxu0 %v452
      %529 = vmatmul.f32.gmra.mxu0 %v448
      %v530 = vpop.f32.mrf.mxu0
      %v531 = vadd.f32 %v511, %v530
      %532 = vdwg.mxu0
      %v533 = vld [vmem:[%s3] sm:$0xff]
      %v534 = vmul.f32 %v533, %v531
      %vm535 = vcmask 64512
      %v536 = vsel %vm535, %v534, 0.0
      %537 = vadd.xlane.f32.xlu0 %v536
      %v538 = vpop.xlane.xlu0 %537
      %v539 = vrot.slane %v538, 4
      %v540 = vadd.f32 %v538, %v539
      %v541 = vrot.slane %v540, 2
      %v542 = vadd.f32 %v540, %v541
      %v543 = vrot.slane %v542, 1
      %v544 = vadd.f32 %v542, %v543
      %s545 = vtos %v544
      %s546 = smul.f32 %s545, -2.0
      %v547 = vlaneseq
      %v548 = vshrl.u32 %v547, 7
      %v549 = vlaneseq
      %v550 = vand.u32 %v549, 127
      %vm551 = vcmp.eq.s32.totalorder %v548, 0
      %vm552 = vcmp.eq.s32.totalorder %v550, 0
      %vm553 = vmand %vm551, %vm552
      %v554 = vstv %s546
      %v555 = vsel %vm553, %v554, 0.0
      %556 = vst [vmem:[#allocation9] sm:$0xff] %v555
    $region41: #{tpu_custom_call.1} parent=1 // pred_fallthru
      _
    // Predicated region
    $region42: #{tpu_custom_call.1} parent=1 // pred_check
      _
    $region43: #{tpu_custom_call.1} parent=1 // pred_check_branch
      %558 = sbr.rel (0) target = $region45
    $region44: #{tpu_custom_call.1} parent=1 // pred_region
      %560 = vsyncadd [#allocation5], 0
      %s562 = sshll.u32 [#allocation9], 4
      %s563 = int_to_ptr.vmem [resolvable:$true] %s562
      %s564 = sshll.u32 %s5, 4
      %s565 = int_to_ptr.hbm [resolvable:$true] %s564
      %567 = dma.vmem_to_hbm [thread:$0]  %s563, 128, %s565, [#allocation5]
    $region45: #{tpu_custom_call.1} parent=1 // pred_fallthru
      _
    // Predicated region
    $region46: #{tpu_custom_call.1} parent=1 // pred_check
      _
    $region47: #{tpu_custom_call.1} parent=1 // pred_check_branch
      %569 = sbr.rel (0) target = $region49
    $region48: #{tpu_custom_call.1} parent=1 // pred_region
      %571 = dma.done [#allocation5], 128
    $region49: #{tpu_custom_call.1} parent=1 // pred_fallthru
      _
    %572 = vsyncpa [#allocation4], 1
    %573 = vsyncpa [#allocation7], 1
    %574 = vsyncpa [#allocation5], 1

</llo_original>
